<compile_context>
chip_gen: v5e
topology: v5e:2x2
jax: 0.10.0
libtpu: 0.0.40
codegen_flags: <defaults>
</compile_context>

<pallas_src>
import functools

import jax
import jax.numpy as jnp
from jax.experimental import pallas as pl
from jax.experimental.pallas import tpu as pltpu

LANE_WIDTH = 512        # lane (last-dim) width of each block; multiple of 128
MAX_BLOCK_ROWS = 512    # sublane rows per block; (512, 512) f32 = 1 MiB / block
HIDDEN = 10


def _round_up(a, b):
    return (a + b - 1) // b * b


def mlp_kernel(params_ref, x_ref, o_ref, *, hidden):
    """Fused Linear(1,H) -> ReLU -> Linear(H,1), elementwise over a dense tile.

    params_ref : SMEM f32[3*H + 1] = [w1 (H) | b1 (H) | w2 (H) | b2 (1)]
    x_ref/o_ref: VMEM f32[block_rows, LANE_WIDTH] dense (sublane x lane) tile.
    """
    x = x_ref[...]
    acc = jnp.zeros_like(x)
    # Unrolled scalar-weight loop (H is a small static int): each term is a
    # scalar*vreg mul/add/max on the VPU, fully lane- and sublane-dense.
    for j in range(hidden):
        w1j = params_ref[j]
        b1j = params_ref[hidden + j]
        w2j = params_ref[2 * hidden + j]
        acc = acc + w2j * jnp.maximum(w1j * x + b1j, 0.0)
    o_ref[...] = (acc + params_ref[3 * hidden]).astype(o_ref.dtype)


def device_1_forward(x, w1, b1, w2, b2):
    """x: (N, 1) f32; w1: (H, 1); b1: (H,); w2: (1, H); b2: (1,). Returns (N, 1)."""
    n = x.shape[0]
    hidden = w1.shape[0]

    # Pack the tiny parameters into a single SMEM-resident vector (one DMA).
    params = jnp.concatenate([
        w1.reshape(-1).astype(jnp.float32),
        b1.reshape(-1).astype(jnp.float32),
        w2.reshape(-1).astype(jnp.float32),
        b2.reshape(-1).astype(jnp.float32),
    ])

    # Dense 2-D layout: batch fills both sublanes and lanes. Only the tail is
    # padded (to a multiple of LANE_WIDTH); when n is already a multiple this
    # path is reshape-only (no extra HBM traffic beyond the kernel's own).
    x_flat = x.reshape(-1).astype(jnp.float32)
    n_cols = LANE_WIDTH
    n_pad = _round_up(n, n_cols)
    if n_pad != n:
        x_flat = jnp.pad(x_flat, (0, n_pad - n))
    rows = n_pad // n_cols
    x2d = x_flat.reshape(rows, n_cols)

    # Block rows: whole array when small (full-dim blocks are always legal),
    # otherwise a multiple-of-8 tile of ~1 MiB so large batches get a multi-step
    # grid (megacore sharding on v7x) while staying well under scoped VMEM.
    block_rows = rows if rows <= MAX_BLOCK_ROWS else MAX_BLOCK_ROWS
    grid = (pl.cdiv(rows, block_rows),)

    kernel = functools.partial(mlp_kernel, hidden=hidden)

    out2d = pl.pallas_call(
        kernel,
        out_shape=jax.ShapeDtypeStruct((rows, n_cols), jnp.float32),
        grid=grid,
        in_specs=[
            pl.BlockSpec(memory_space=pltpu.MemorySpace.SMEM),      # packed params
            pl.BlockSpec((block_rows, n_cols), lambda i: (i, 0)),   # x tile
        ],
        out_specs=pl.BlockSpec((block_rows, n_cols), lambda i: (i, 0)),
        compiler_params=pltpu.CompilerParams(
            dimension_semantics=("parallel",),
        ),
        cost_estimate=pl.CostEstimate(
            flops=5 * hidden * n,        # ~50 VPU ops per element
            transcendentals=0,
            bytes_accessed=8 * n,        # 4 B read + 4 B write per element
        ),
    )(params, x2d)

    out_flat = out2d.reshape(-1)
    if n_pad != n:
        out_flat = out_flat[:n]
    return out_flat.reshape(n, 1)


def init_params(key, in_dim=1, hidden=HIDDEN, out_dim=1):
    """Deterministic PyTorch-style (uniform +-1/sqrt(fan_in)) init."""
    k1, k2, k3, k4 = jax.random.split(key, 4)
    bound1 = 1.0 / jnp.sqrt(in_dim)
    bound2 = 1.0 / jnp.sqrt(hidden)
    w1 = jax.random.uniform(k1, (hidden, in_dim), jnp.float32, -bound1, bound1)
    b1 = jax.random.uniform(k2, (hidden,), jnp.float32, -bound1, bound1)
    w2 = jax.random.uniform(k3, (out_dim, hidden), jnp.float32, -bound2, bound2)
    b2 = jax.random.uniform(k4, (out_dim,), jnp.float32, -bound2, bound2)
    return w1, b1, w2, b2


def _reference(x, w1, b1, w2, b2):
    return jnp.maximum(x @ w1.T + b1, 0.0) @ w2.T + b2


if __name__ == "__main__":
    key = jax.random.PRNGKey(0)
    w1, b1, w2, b2 = init_params(key)

    # Same input as the PyTorch script: [-7..7] as a (15, 1) float32 column.
    x = jnp.arange(-7, 8, dtype=jnp.float32).reshape(-1, 1)
    out = device_1_forward(x, w1, b1, w2, b2)
    out = jax.block_until_ready(out)
    assert out.shape == (15, 1)
    assert jnp.allclose(out, _reference(x, w1, b1, w2, b2), atol=1e-5, rtol=1e-5), \
        "mismatch vs reference (n=15)"

    # Small secondary check exercising the multi-row dense block + tail-pad path.
    x2 = jax.random.normal(jax.random.PRNGKey(1), (1000, 1), jnp.float32)
    out2 = jax.block_until_ready(device_1_forward(x2, w1, b1, w2, b2))
    assert out2.shape == (1000, 1)
    assert jnp.allclose(out2, _reference(x2, w1, b1, w2, b2), atol=1e-5, rtol=1e-5), \
        "mismatch vs reference (n=1000)"

    print("KERNEL_OK")
</pallas_src>

<mosaic_0001>
module attributes {stable_mosaic.version = 11 : i64} {
  func.func @mlp_kernel(%arg0: i32, %arg1: memref<31xf32, #tpu.memory_space<smem>>, %arg2: memref<1x512xf32, #tpu.memory_space<vmem>>, %arg3: memref<1x512xf32, #tpu.memory_space<vmem>>) attributes {dimension_semantics = [#tpu.dimension_semantics<parallel>], iteration_bounds = array<i64: 1>, scalar_prefetch = 0 : i64, scratch_operands = 0 : i64, tpu.core_type = #tpu.core_type<tc>, window_params = [{transform_indices = @transform_0, window_bounds = array<i64: 31>}, {transform_indices = @transform_1, window_bounds = array<i64: 1, 512>}, {transform_indices = @transform_2, window_bounds = array<i64: 1, 512>}]} {
    %c0 = arith.constant 0 : index
    %c0_0 = arith.constant 0 : index
    %0 = vector.load %arg2[%c0, %c0_0] : memref<1x512xf32, #tpu.memory_space<vmem>>, vector<1x512xf32>
    %cst = arith.constant 0.000000e+00 : f32
    %1 = vector.broadcast %cst : f32 to vector<1x512xf32>
    %c0_1 = arith.constant 0 : index
    %2 = memref.load %arg1[%c0_1] : memref<31xf32, #tpu.memory_space<smem>>
    %c10 = arith.constant 10 : index
    %3 = memref.load %arg1[%c10] : memref<31xf32, #tpu.memory_space<smem>>
    %c20 = arith.constant 20 : index
    %4 = memref.load %arg1[%c20] : memref<31xf32, #tpu.memory_space<smem>>
    %5 = vector.broadcast %2 : f32 to vector<1x512xf32>
    %6 = arith.mulf %5, %0 : vector<1x512xf32>
    %7 = vector.broadcast %3 : f32 to vector<1x512xf32>
    %8 = arith.addf %6, %7 : vector<1x512xf32>
    %cst_2 = arith.constant 0.000000e+00 : f32
    %9 = vector.broadcast %cst_2 : f32 to vector<1x512xf32>
    %10 = arith.maximumf %8, %9 : vector<1x512xf32>
    %11 = vector.broadcast %4 : f32 to vector<1x512xf32>
    %12 = arith.mulf %11, %10 : vector<1x512xf32>
    %13 = arith.addf %1, %12 : vector<1x512xf32>
    %c1 = arith.constant 1 : index
    %14 = memref.load %arg1[%c1] : memref<31xf32, #tpu.memory_space<smem>>
    %c11 = arith.constant 11 : index
    %15 = memref.load %arg1[%c11] : memref<31xf32, #tpu.memory_space<smem>>
    %c21 = arith.constant 21 : index
    %16 = memref.load %arg1[%c21] : memref<31xf32, #tpu.memory_space<smem>>
    %17 = vector.broadcast %14 : f32 to vector<1x512xf32>
    %18 = arith.mulf %17, %0 : vector<1x512xf32>
    %19 = vector.broadcast %15 : f32 to vector<1x512xf32>
    %20 = arith.addf %18, %19 : vector<1x512xf32>
    %cst_3 = arith.constant 0.000000e+00 : f32
    %21 = vector.broadcast %cst_3 : f32 to vector<1x512xf32>
    %22 = arith.maximumf %20, %21 : vector<1x512xf32>
    %23 = vector.broadcast %16 : f32 to vector<1x512xf32>
    %24 = arith.mulf %23, %22 : vector<1x512xf32>
    %25 = arith.addf %13, %24 : vector<1x512xf32>
    %c2 = arith.constant 2 : index
    %26 = memref.load %arg1[%c2] : memref<31xf32, #tpu.memory_space<smem>>
    %c12 = arith.constant 12 : index
    %27 = memref.load %arg1[%c12] : memref<31xf32, #tpu.memory_space<smem>>
    %c22 = arith.constant 22 : index
    %28 = memref.load %arg1[%c22] : memref<31xf32, #tpu.memory_space<smem>>
    %29 = vector.broadcast %26 : f32 to vector<1x512xf32>
    %30 = arith.mulf %29, %0 : vector<1x512xf32>
    %31 = vector.broadcast %27 : f32 to vector<1x512xf32>
    %32 = arith.addf %30, %31 : vector<1x512xf32>
    %cst_4 = arith.constant 0.000000e+00 : f32
    %33 = vector.broadcast %cst_4 : f32 to vector<1x512xf32>
    %34 = arith.maximumf %32, %33 : vector<1x512xf32>
    %35 = vector.broadcast %28 : f32 to vector<1x512xf32>
    %36 = arith.mulf %35, %34 : vector<1x512xf32>
    %37 = arith.addf %25, %36 : vector<1x512xf32>
    %c3 = arith.constant 3 : index
    %38 = memref.load %arg1[%c3] : memref<31xf32, #tpu.memory_space<smem>>
    %c13 = arith.constant 13 : index
    %39 = memref.load %arg1[%c13] : memref<31xf32, #tpu.memory_space<smem>>
    %c23 = arith.constant 23 : index
    %40 = memref.load %arg1[%c23] : memref<31xf32, #tpu.memory_space<smem>>
    %41 = vector.broadcast %38 : f32 to vector<1x512xf32>
    %42 = arith.mulf %41, %0 : vector<1x512xf32>
    %43 = vector.broadcast %39 : f32 to vector<1x512xf32>
    %44 = arith.addf %42, %43 : vector<1x512xf32>
    %cst_5 = arith.constant 0.000000e+00 : f32
    %45 = vector.broadcast %cst_5 : f32 to vector<1x512xf32>
    %46 = arith.maximumf %44, %45 : vector<1x512xf32>
    %47 = vector.broadcast %40 : f32 to vector<1x512xf32>
    %48 = arith.mulf %47, %46 : vector<1x512xf32>
    %49 = arith.addf %37, %48 : vector<1x512xf32>
    %c4 = arith.constant 4 : index
    %50 = memref.load %arg1[%c4] : memref<31xf32, #tpu.memory_space<smem>>
    %c14 = arith.constant 14 : index
    %51 = memref.load %arg1[%c14] : memref<31xf32, #tpu.memory_space<smem>>
    %c24 = arith.constant 24 : index
    %52 = memref.load %arg1[%c24] : memref<31xf32, #tpu.memory_space<smem>>
    %53 = vector.broadcast %50 : f32 to vector<1x512xf32>
    %54 = arith.mulf %53, %0 : vector<1x512xf32>
    %55 = vector.broadcast %51 : f32 to vector<1x512xf32>
    %56 = arith.addf %54, %55 : vector<1x512xf32>
    %cst_6 = arith.constant 0.000000e+00 : f32
    %57 = vector.broadcast %cst_6 : f32 to vector<1x512xf32>
    %58 = arith.maximumf %56, %57 : vector<1x512xf32>
    %59 = vector.broadcast %52 : f32 to vector<1x512xf32>
    %60 = arith.mulf %59, %58 : vector<1x512xf32>
    %61 = arith.addf %49, %60 : vector<1x512xf32>
    %c5 = arith.constant 5 : index
    %62 = memref.load %arg1[%c5] : memref<31xf32, #tpu.memory_space<smem>>
    %c15 = arith.constant 15 : index
    %63 = memref.load %arg1[%c15] : memref<31xf32, #tpu.memory_space<smem>>
    %c25 = arith.constant 25 : index
    %64 = memref.load %arg1[%c25] : memref<31xf32, #tpu.memory_space<smem>>
    %65 = vector.broadcast %62 : f32 to vector<1x512xf32>
    %66 = arith.mulf %65, %0 : vector<1x512xf32>
    %67 = vector.broadcast %63 : f32 to vector<1x512xf32>
    %68 = arith.addf %66, %67 : vector<1x512xf32>
    %cst_7 = arith.constant 0.000000e+00 : f32
    %69 = vector.broadcast %cst_7 : f32 to vector<1x512xf32>
    %70 = arith.maximumf %68, %69 : vector<1x512xf32>
    %71 = vector.broadcast %64 : f32 to vector<1x512xf32>
    %72 = arith.mulf %71, %70 : vector<1x512xf32>
    %73 = arith.addf %61, %72 : vector<1x512xf32>
    %c6 = arith.constant 6 : index
    %74 = memref.load %arg1[%c6] : memref<31xf32, #tpu.memory_space<smem>>
    %c16 = arith.constant 16 : index
    %75 = memref.load %arg1[%c16] : memref<31xf32, #tpu.memory_space<smem>>
    %c26 = arith.constant 26 : index
    %76 = memref.load %arg1[%c26] : memref<31xf32, #tpu.memory_space<smem>>
    %77 = vector.broadcast %74 : f32 to vector<1x512xf32>
    %78 = arith.mulf %77, %0 : vector<1x512xf32>
    %79 = vector.broadcast %75 : f32 to vector<1x512xf32>
    %80 = arith.addf %78, %79 : vector<1x512xf32>
    %cst_8 = arith.constant 0.000000e+00 : f32
    %81 = vector.broadcast %cst_8 : f32 to vector<1x512xf32>
    %82 = arith.maximumf %80, %81 : vector<1x512xf32>
    %83 = vector.broadcast %76 : f32 to vector<1x512xf32>
    %84 = arith.mulf %83, %82 : vector<1x512xf32>
    %85 = arith.addf %73, %84 : vector<1x512xf32>
    %c7 = arith.constant 7 : index
    %86 = memref.load %arg1[%c7] : memref<31xf32, #tpu.memory_space<smem>>
    %c17 = arith.constant 17 : index
    %87 = memref.load %arg1[%c17] : memref<31xf32, #tpu.memory_space<smem>>
    %c27 = arith.constant 27 : index
    %88 = memref.load %arg1[%c27] : memref<31xf32, #tpu.memory_space<smem>>
    %89 = vector.broadcast %86 : f32 to vector<1x512xf32>
    %90 = arith.mulf %89, %0 : vector<1x512xf32>
    %91 = vector.broadcast %87 : f32 to vector<1x512xf32>
    %92 = arith.addf %90, %91 : vector<1x512xf32>
    %cst_9 = arith.constant 0.000000e+00 : f32
    %93 = vector.broadcast %cst_9 : f32 to vector<1x512xf32>
    %94 = arith.maximumf %92, %93 : vector<1x512xf32>
    %95 = vector.broadcast %88 : f32 to vector<1x512xf32>
    %96 = arith.mulf %95, %94 : vector<1x512xf32>
    %97 = arith.addf %85, %96 : vector<1x512xf32>
    %c8 = arith.constant 8 : index
    %98 = memref.load %arg1[%c8] : memref<31xf32, #tpu.memory_space<smem>>
    %c18 = arith.constant 18 : index
    %99 = memref.load %arg1[%c18] : memref<31xf32, #tpu.memory_space<smem>>
    %c28 = arith.constant 28 : index
    %100 = memref.load %arg1[%c28] : memref<31xf32, #tpu.memory_space<smem>>
    %101 = vector.broadcast %98 : f32 to vector<1x512xf32>
    %102 = arith.mulf %101, %0 : vector<1x512xf32>
    %103 = vector.broadcast %99 : f32 to vector<1x512xf32>
    %104 = arith.addf %102, %103 : vector<1x512xf32>
    %cst_10 = arith.constant 0.000000e+00 : f32
    %105 = vector.broadcast %cst_10 : f32 to vector<1x512xf32>
    %106 = arith.maximumf %104, %105 : vector<1x512xf32>
    %107 = vector.broadcast %100 : f32 to vector<1x512xf32>
    %108 = arith.mulf %107, %106 : vector<1x512xf32>
    %109 = arith.addf %97, %108 : vector<1x512xf32>
    %c9 = arith.constant 9 : index
    %110 = memref.load %arg1[%c9] : memref<31xf32, #tpu.memory_space<smem>>
    %c19 = arith.constant 19 : index
    %111 = memref.load %arg1[%c19] : memref<31xf32, #tpu.memory_space<smem>>
    %c29 = arith.constant 29 : index
    %112 = memref.load %arg1[%c29] : memref<31xf32, #tpu.memory_space<smem>>
    %113 = vector.broadcast %110 : f32 to vector<1x512xf32>
    %114 = arith.mulf %113, %0 : vector<1x512xf32>
    %115 = vector.broadcast %111 : f32 to vector<1x512xf32>
    %116 = arith.addf %114, %115 : vector<1x512xf32>
    %cst_11 = arith.constant 0.000000e+00 : f32
    %117 = vector.broadcast %cst_11 : f32 to vector<1x512xf32>
    %118 = arith.maximumf %116, %117 : vector<1x512xf32>
    %119 = vector.broadcast %112 : f32 to vector<1x512xf32>
    %120 = arith.mulf %119, %118 : vector<1x512xf32>
    %121 = arith.addf %109, %120 : vector<1x512xf32>
    %c30 = arith.constant 30 : index
    %122 = memref.load %arg1[%c30] : memref<31xf32, #tpu.memory_space<smem>>
    %123 = vector.broadcast %122 : f32 to vector<1x512xf32>
    %124 = arith.addf %121, %123 : vector<1x512xf32>
    %c0_12 = arith.constant 0 : index
    %c0_13 = arith.constant 0 : index
    %125 = vector.load %arg3[%c0_12, %c0_13] : memref<1x512xf32, #tpu.memory_space<vmem>>, vector<1x512xf32>
    tpu.vector_store %arg3[%c0_12, %c0_13], %124 {strides = array<i32>} : memref<1x512xf32, #tpu.memory_space<vmem>>, vector<1x512xf32>,
    return
  }
  func.func @transform_0(%arg0: i32) -> i32 {
    %c0_i32 = arith.constant 0 : i32
    %c0_i32_0 = arith.constant 0 : i32
    return %c0_i32 : i32
  }
  func.func @transform_1(%arg0: i32) -> (i32, i32) {
    %c0_i32 = arith.constant 0 : i32
    %c0_i32_0 = arith.constant 0 : i32
    return %arg0, %c0_i32 : i32, i32
  }
  func.func @transform_2(%arg0: i32) -> (i32, i32) {
    %c0_i32 = arith.constant 0 : i32
    %c0_i32_0 = arith.constant 0 : i32
    return %arg0, %c0_i32 : i32, i32
  }
}

</mosaic_0001>

<llo_original>
// kernel: tpu_custom_call.1
$region0: #{tpu_custom_call.1}
  #allocation0 [shape = 'u32[]', space=smem, size = 0x4, offset = 0x4, fixed_abs, tag = 'smem constant byte address 0x4 - core index']
  #allocation1 [shape = 'u32[72,128]{1,0:T(1,128)}', space=vmem, size = 0x9000, scoped, tag = 'internal scratch']
  %s0 = inlined_call_operand.hbm [shape: f32[31], index: 0, kind: input, shape index: {}]
  %s1 = inlined_call_operand.hbm [shape: f32[1,512], index: 1, kind: input, shape index: {}]
  %s2 = inlined_call_operand.hbm [shape: f32[1,512], index: 2, kind: output, shape index: {}]
  %s3 = sld [smem:[#allocation0]]
  $region26: #{tpu_custom_call.1} parent=0
    _
  %s5 = ssub.s32 1, %s3
  %s6 = scalar_select 0, %s5, %s3
  $region1: #{tpu_custom_call.1} parent=0
    #allocation2 [shape = 'u8[512]{0}', space=smem, size = 0x200, scoped, tag = 'input window, operand 0, single buffered']
    #allocation3 [shape = 's32[1]{0}', space=sflag, size = 0x4, scoped, tag = 'scoped memory for tpu_custom_call.1']
    #allocation4 [shape = 's32[1]{0}', space=sflag, size = 0x4, scoped, tag = 'scoped memory for tpu_custom_call.1']
    #allocation5 [shape = 's32[1]{0}', space=sflag, size = 0x4, scoped, tag = 'scoped memory for tpu_custom_call.1']
    #allocation6 [shape = 'u8[2048]{0}', space=vmem, size = 0x800, scoped, tag = 'input window, operand 1, single buffered']
    #allocation7 [shape = 'u8[2048]{0}', space=vmem, size = 0x800, scoped, tag = 'output window, operand 0, single buffered']
    %7 = vsyncpa [#allocation5], 0
    %8 = vsyncpa [#allocation3], 0
    %9 = vsyncpa [#allocation4], 0
    // Predicated region
    $region2: #{tpu_custom_call.1} parent=1 // pred_check
      _
    $region3: #{tpu_custom_call.1} parent=1 // pred_check_branch
      %11 = sbr.rel (0) target = $region5
    $region4: #{tpu_custom_call.1} parent=1 // pred_region
      %13 = vsyncadd [#allocation5], 0
      %s15 = sshll.u32 %s0, 4
      %s16 = int_to_ptr.hbm [resolvable:$true] %s15
      %18 = dma.hbm_to_smem %s16, 16, [#allocation2], [#allocation5]
    $region5: #{tpu_custom_call.1} parent=1 // pred_fallthru
      _
    // Predicated region
    $region6: #{tpu_custom_call.1} parent=1 // pred_check
      _
    $region7: #{tpu_custom_call.1} parent=1 // pred_check_branch
      %20 = sbr.rel (0) target = $region9
    $region8: #{tpu_custom_call.1} parent=1 // pred_region
      %22 = vsyncadd [#allocation3], 0
      %s24 = sshll.u32 %s1, 4
      %s25 = int_to_ptr.hbm [resolvable:$true] %s24
      %s26 = sshll.u32 [#allocation6], 4
      %s27 = int_to_ptr.vmem [resolvable:$true] %s26
      %29 = dma.hbm_to_vmem [thread:$0]  %s25, 64, %s27, [#allocation3]
    $region9: #{tpu_custom_call.1} parent=1 // pred_fallthru
      _
    // Predicated region
    $region10: #{tpu_custom_call.1} parent=1 // pred_check
      _
    $region11: #{tpu_custom_call.1} parent=1 // pred_check_branch
      %31 = sbr.rel (0) target = $region13
    $region12: #{tpu_custom_call.1} parent=1 // pred_region
      %33 = dma.done [#allocation5], 16
    $region13: #{tpu_custom_call.1} parent=1 // pred_fallthru
      _
    // Predicated region
    $region14: #{tpu_custom_call.1} parent=1 // pred_check
      _
    $region15: #{tpu_custom_call.1} parent=1 // pred_check_branch
      %35 = sbr.rel (0) target = $region17
    $region16: #{tpu_custom_call.1} parent=1 // pred_region
      %37 = dma.done [#allocation3], 64
    $region17: #{tpu_custom_call.1} parent=1 // pred_fallthru
      _
    %38 = sfence
    %v39 = vld [vmem:[#allocation6] sm:$0xf]
    %s40 = sld [smem:[#allocation2]]
    %s41 = sld [smem:[#allocation2 + $0xa]]
    %s42 = sld [smem:[#allocation2 + $0x14]]
    %v43 = vstv %s40
    %v44 = vmul.f32 %v43, %v39
    %v45 = vstv %s41
    %v46 = vadd.f32 %v44, %v45
    %v47 = vmax.f32 %v46, 0.0
    %v48 = vstv %s42
    %v49 = vmul.f32 %v48, %v47
    %v50 = vadd.f32 %v49, 0.0
    %s51 = sld [smem:[#allocation2 + $0x1]]
    %s52 = sld [smem:[#allocation2 + $0xb]]
    %s53 = sld [smem:[#allocation2 + $0x15]]
    %v54 = vstv %s51
    %v55 = vmul.f32 %v54, %v39
    %v56 = vstv %s52
    %v57 = vadd.f32 %v55, %v56
    %v58 = vmax.f32 %v57, 0.0
    %v59 = vstv %s53
    %v60 = vmul.f32 %v59, %v58
    %v61 = vadd.f32 %v50, %v60
    %s62 = sld [smem:[#allocation2 + $0x2]]
    %s63 = sld [smem:[#allocation2 + $0xc]]
    %s64 = sld [smem:[#allocation2 + $0x16]]
    %v65 = vstv %s62
    %v66 = vmul.f32 %v65, %v39
    %v67 = vstv %s63
    %v68 = vadd.f32 %v66, %v67
    %v69 = vmax.f32 %v68, 0.0
    %v70 = vstv %s64
    %v71 = vmul.f32 %v70, %v69
    %v72 = vadd.f32 %v61, %v71
    %s73 = sld [smem:[#allocation2 + $0x3]]
    %s74 = sld [smem:[#allocation2 + $0xd]]
    %s75 = sld [smem:[#allocation2 + $0x17]]
    %v76 = vstv %s73
    %v77 = vmul.f32 %v76, %v39
    %v78 = vstv %s74
    %v79 = vadd.f32 %v77, %v78
    %v80 = vmax.f32 %v79, 0.0
    %v81 = vstv %s75
    %v82 = vmul.f32 %v81, %v80
    %v83 = vadd.f32 %v72, %v82
    %s84 = sld [smem:[#allocation2 + $0x4]]
    %s85 = sld [smem:[#allocation2 + $0xe]]
    %s86 = sld [smem:[#allocation2 + $0x18]]
    %v87 = vstv %s84
    %v88 = vmul.f32 %v87, %v39
    %v89 = vstv %s85
    %v90 = vadd.f32 %v88, %v89
    %v91 = vmax.f32 %v90, 0.0
    %v92 = vstv %s86
    %v93 = vmul.f32 %v92, %v91
    %v94 = vadd.f32 %v83, %v93
    %s95 = sld [smem:[#allocation2 + $0x5]]
    %s96 = sld [smem:[#allocation2 + $0xf]]
    %s97 = sld [smem:[#allocation2 + $0x19]]
    %v98 = vstv %s95
    %v99 = vmul.f32 %v98, %v39
    %v100 = vstv %s96
    %v101 = vadd.f32 %v99, %v100
    %v102 = vmax.f32 %v101, 0.0
    %v103 = vstv %s97
    %v104 = vmul.f32 %v103, %v102
    %v105 = vadd.f32 %v94, %v104
    %s106 = sld [smem:[#allocation2 + $0x6]]
    %s107 = sld [smem:[#allocation2 + $0x10]]
    %s108 = sld [smem:[#allocation2 + $0x1a]]
    %v109 = vstv %s106
    %v110 = vmul.f32 %v109, %v39
    %v111 = vstv %s107
    %v112 = vadd.f32 %v110, %v111
    %v113 = vmax.f32 %v112, 0.0
    %v114 = vstv %s108
    %v115 = vmul.f32 %v114, %v113
    %v116 = vadd.f32 %v105, %v115
    %s117 = sld [smem:[#allocation2 + $0x7]]
    %s118 = sld [smem:[#allocation2 + $0x11]]
    %s119 = sld [smem:[#allocation2 + $0x1b]]
    %v120 = vstv %s117
    %v121 = vmul.f32 %v120, %v39
    %v122 = vstv %s118
    %v123 = vadd.f32 %v121, %v122
    %v124 = vmax.f32 %v123, 0.0
    %v125 = vstv %s119
    %v126 = vmul.f32 %v125, %v124
    %v127 = vadd.f32 %v116, %v126
    %s128 = sld [smem:[#allocation2 + $0x8]]
    %s129 = sld [smem:[#allocation2 + $0x12]]
    %s130 = sld [smem:[#allocation2 + $0x1c]]
    %v131 = vstv %s128
    %v132 = vmul.f32 %v131, %v39
    %v133 = vstv %s129
    %v134 = vadd.f32 %v132, %v133
    %v135 = vmax.f32 %v134, 0.0
    %v136 = vstv %s130
    %v137 = vmul.f32 %v136, %v135
    %v138 = vadd.f32 %v127, %v137
    %s139 = sld [smem:[#allocation2 + $0x9]]
    %s140 = sld [smem:[#allocation2 + $0x13]]
    %s141 = sld [smem:[#allocation2 + $0x1d]]
    %v142 = vstv %s139
    %v143 = vmul.f32 %v142, %v39
    %v144 = vstv %s140
    %v145 = vadd.f32 %v143, %v144
    %v146 = vmax.f32 %v145, 0.0
    %v147 = vstv %s141
    %v148 = vmul.f32 %v147, %v146
    %v149 = vadd.f32 %v138, %v148
    %s150 = sld [smem:[#allocation2 + $0x1e]]
    %v151 = vstv %s150
    %v152 = vadd.f32 %v149, %v151
    %v153 = vlaneseq
    %vm154 = vcmp.ge.s32.totalorder %v153, 0
    %vm155 = vcmp.lt.s32.totalorder %v153, 512
    %vm156 = vmand %vm154, %vm155
    %157 = vst.msk [vmem:[#allocation7] sm:$0xf] %vm156, %v152
    // Predicated region
    $region18: #{tpu_custom_call.1} parent=1 // pred_check
      _
    $region19: #{tpu_custom_call.1} parent=1 // pred_check_branch
      %159 = sbr.rel (0) target = $region21
    $region20: #{tpu_custom_call.1} parent=1 // pred_region
      %161 = vsyncadd [#allocation4], 0
      %s163 = sshll.u32 [#allocation7], 4
      %s164 = int_to_ptr.vmem [resolvable:$true] %s163
      %s165 = sshll.u32 %s2, 4
      %s166 = int_to_ptr.hbm [resolvable:$true] %s165
      %168 = dma.vmem_to_hbm [thread:$0]  %s164, 64, %s166, [#allocation4]
    $region21: #{tpu_custom_call.1} parent=1 // pred_fallthru
      _
    // Predicated region
    $region22: #{tpu_custom_call.1} parent=1 // pred_check
      _
    $region23: #{tpu_custom_call.1} parent=1 // pred_check_branch
      %170 = sbr.rel (0) target = $region25
    $region24: #{tpu_custom_call.1} parent=1 // pred_region
      %172 = dma.done [#allocation4], 64
    $region25: #{tpu_custom_call.1} parent=1 // pred_fallthru
      _
    %173 = vsyncpa [#allocation3], 1
    %174 = vsyncpa [#allocation4], 1
    %175 = vsyncpa [#allocation5], 1

</llo_original>
